<compile_context>
chip_gen: v6e
topology: v6e:2x2x1
jax: 0.10.0
libtpu: 0.0.40
codegen_flags: <defaults>
</compile_context>

<pallas_src>
import functools

import jax
import jax.numpy as jnp
import numpy as np
from jax.experimental import pallas as pl
from jax.experimental.pallas import tpu as pltpu

BN_EPS = 1e-5
LEAKY_SLOPE = 0.2
LANE = 128
SUBLANE = 8
_MAX_TILE_ROWS = 1024          # upper cap on batch-tile rows
_ACT_VMEM_BUDGET = 8 << 20     # bytes of VMEM budgeted for activations per tile


def _round_up(x, m):
    return ((x + m - 1) // m) * m


def _num_tensorcores():
    """v7x has 2 TensorCores per chip; v5e/v6e have 1 (fallback: 1)."""
    try:
        kind = jax.devices()[0].device_kind.lower()
        if "v7" in kind:
            return 2
    except Exception:
        pass
    return 1


def _generator_kernel(num_layers, z_ref, *refs):
    """Fused [Linear(+folded BN) -> LeakyReLU] x (L-1) -> Linear -> Tanh.

    refs = [(Wt, b)] * num_layers + [out].  Parameters are fully resident in
    VMEM (constant block index across the batch grid); only the batch axis of
    z / out is tiled.
    """
    out_ref = refs[-1]
    x = z_ref[...]                         # (tile_b, feat); already param dtype for layer 0
    for layer in range(num_layers):
        w_ref = refs[2 * layer]
        b_ref = refs[2 * layer + 1]
        xm = x if x.dtype == w_ref.dtype else x.astype(w_ref.dtype)
        y = jnp.dot(xm, w_ref[...], preferred_element_type=jnp.float32)  # MXU, f32 acc
        y = y + b_ref[...]                 # folded-BN bias, f32
        if layer < num_layers - 1:
            # LeakyReLU(0.2); BatchNorm already folded into (W, b).
            x = jnp.maximum(y, LEAKY_SLOPE * y)
            # Dropout(0.2): identity in eval mode.
        else:
            out_ref[...] = jnp.tanh(y)


def prepare_generator_params(params, *, param_dtype=jnp.float32):
    """One-time parameter preparation (do NOT redo per forward call).

    Folds inference-mode BatchNorm into the preceding Linear
      W' = W * (gamma * inv_std),  b' = (b - mean) * gamma * inv_std + beta,
    transposes weights to (in, out), zero-pads every feature dim to a multiple
    of 128 and casts weights to `param_dtype` (biases stay f32).
    """
    hidden = params["hidden"]
    latent = hidden[0][0].shape[1] if hidden else params["w_out"].shape[1]

    layers = []
    for (w, b, gamma, beta, mean, var) in hidden:
        scale = gamma * jax.lax.rsqrt(var + BN_EPS)           # (h,)
        layers.append(((w * scale[:, None]).T,                # (in, h)
                       (b - mean) * scale + beta))            # (h,)
    layers.append((params["w_out"].T, params["b_out"]))

    latent_pad = _round_up(latent, LANE)
    in_pad = latent_pad
    padded = []
    feat_pads = [latent_pad]
    for (w_f, b_f) in layers:
        n = w_f.shape[1]
        n_pad = _round_up(n, LANE)
        w_p = jnp.pad(w_f, ((0, in_pad - w_f.shape[0]), (0, n_pad - n))).astype(param_dtype)
        b_p = jnp.pad(b_f, (0, n_pad - n))[None, :].astype(jnp.float32)
        padded.append((jax.device_put(w_p), jax.device_put(b_p)))
        feat_pads.append(n_pad)
        in_pad = n_pad

    return {
        "layers": padded,
        "latent": int(latent),
        "latent_pad": int(latent_pad),
        "out_dim": int(params["w_out"].shape[0]),
        "out_pad": int(in_pad),
        "widest_pad": int(max(feat_pads)),
    }


def generator_forward(z, prepared, *, tile_b=None, training=False,
                      vmem_limit_bytes=None, param_buffering=None):
    """Fused generator forward.  z: (B, latent) -> (B, output_dim) float32."""
    if training:
        # TODO(synk): training-mode batch-stat BatchNorm and stochastic Dropout
        # (pltpu.prng_*) are not implemented; this kernel is eval/inference only.
        raise NotImplementedError("generator_forward implements eval mode only")

    B, latent_in = z.shape
    assert latent_in == prepared["latent"]
    layers = prepared["layers"]
    num_layers = len(layers)
    latent_pad = prepared["latent_pad"]
    out_pad = prepared["out_pad"]
    out_dim = prepared["out_dim"]
    widest = prepared["widest_pad"]

    # ---- Batch tile selection ----
    if tile_b is None:
        rows_cap = (_ACT_VMEM_BUDGET // (4 * max(1, 2 * widest))) // SUBLANE * SUBLANE
        rows_cap = int(min(max(SUBLANE, rows_cap), _MAX_TILE_ROWS))
        if _num_tensorcores() >= 2:
            # v7x: keep >=2 grid steps so megacore sharding feeds both TCs.
            tile_b = min(rows_cap, _round_up(pl.cdiv(B, 2), SUBLANE))
        else:
            # v5e/v6e: single TC -> collapse to one grid step when it fits.
            tile_b = min(rows_cap, _round_up(B, SUBLANE))
    B_pad = _round_up(B, tile_b)
    grid = (B_pad // tile_b,)

    # ---- Input: cast to weight dtype once, pad batch/feature dims ----
    # TODO(synk): for very large B, switch to an unpadded ragged last tile to
    # avoid the extra HBM pass over z.
    z_p = z.astype(layers[0][0].dtype)
    if (B_pad, latent_pad) != (B, latent_in):
        z_p = jnp.pad(z_p, ((0, B_pad - B), (0, latent_pad - latent_in)))

    # ---- Specs ----
    def _param_spec(shape):
        if param_buffering is None:
            return pl.BlockSpec(shape, lambda i: (0, 0))
        # TODO(synk): use param_buffering=1 (single-buffered constant blocks) and
        # K-tiling once hidden dims reach GAN sizes on v7x's 64 MiB VMEM.
        return pl.BlockSpec(shape, lambda i: (0, 0),
                            pipeline_mode=pl.Buffered(param_buffering))

    inputs = [z_p]
    in_specs = [pl.BlockSpec((tile_b, latent_pad), lambda i: (i, 0))]
    param_bytes = 0
    for (w_p, b_p) in layers:
        inputs.append(w_p)
        in_specs.append(_param_spec(w_p.shape))
        inputs.append(b_p)
        in_specs.append(_param_spec(b_p.shape))
        param_bytes += w_p.size * w_p.dtype.itemsize + b_p.size * b_p.dtype.itemsize

    # ---- Explicit VMEM budget: params (double-buffered worst case) + I/O blocks
    # (double-buffered) + intermediate activations + headroom ----
    if vmem_limit_bytes is None:
        io_bytes = 2 * tile_b * (latent_pad + out_pad) * 4
        act_bytes = 2 * tile_b * widest * 4
        vmem_limit_bytes = int(min(64 << 20,
                                   2 * param_bytes + io_bytes + act_bytes + (4 << 20)))

    kernel = functools.partial(_generator_kernel, num_layers)
    out = pl.pallas_call(
        kernel,
        out_shape=jax.ShapeDtypeStruct((B_pad, out_pad), jnp.float32),
        grid=grid,
        in_specs=in_specs,
        out_specs=pl.BlockSpec((tile_b, out_pad), lambda i: (i, 0)),
        compiler_params=pltpu.CompilerParams(
            dimension_semantics=("parallel",),
            vmem_limit_bytes=vmem_limit_bytes),
    )(*inputs)
    return out[:B, :out_dim]


def init_generator_params(key, latent_dim, hidden_dims, output_dim):
    """Deterministic synthetic parameters (shapes match the PyTorch module)."""
    params = {"hidden": []}
    prev = latent_dim
    for h in hidden_dims:
        key, kw, kb, kg, kbe, km, kv = jax.random.split(key, 7)
        bound = 1.0 / np.sqrt(prev)
        w = jax.random.uniform(kw, (h, prev), jnp.float32, -bound, bound)
        b = jax.random.uniform(kb, (h,), jnp.float32, -bound, bound)
        gamma = 1.0 + 0.1 * jax.random.normal(kg, (h,), jnp.float32)
        beta = 0.1 * jax.random.normal(kbe, (h,), jnp.float32)
        mean = 0.1 * jax.random.normal(km, (h,), jnp.float32)
        var = jnp.abs(1.0 + 0.1 * jax.random.normal(kv, (h,), jnp.float32))
        params["hidden"].append((w, b, gamma, beta, mean, var))
        prev = h
    key, kw, kb = jax.random.split(key, 3)
    bound = 1.0 / np.sqrt(prev)
    params["w_out"] = jax.random.uniform(kw, (output_dim, prev), jnp.float32, -bound, bound)
    params["b_out"] = jax.random.uniform(kb, (output_dim,), jnp.float32, -bound, bound)
    return params


def generator_reference(z, params):
    """Pure-JAX reference (un-folded BN, eval-mode dropout)."""
    x = z
    for (w, b, gamma, beta, mean, var) in params["hidden"]:
        x = x @ w.T + b
        x = (x - mean) * jax.lax.rsqrt(var + BN_EPS) * gamma + beta
        x = jnp.where(x >= 0, x, LEAKY_SLOPE * x)
    x = x @ params["w_out"].T + params["b_out"]
    return jnp.tanh(x)


if __name__ == "__main__":
    latent_dim = 32
    hidden_dims = [64, 32]
    output_dim = 16
    batch = 52  # not a multiple of 8: exercises batch padding / tile selection

    key = jax.random.PRNGKey(0)
    key, zk = jax.random.split(key)
    z = jax.random.normal(zk, (batch, latent_dim), jnp.float32)
    params = init_generator_params(key, latent_dim, hidden_dims, output_dim)

    ref = jax.block_until_ready(generator_reference(z, params))

    # One-time parameter preparation (cached across calls), f32 weights.
    prep_f32 = prepare_generator_params(params, param_dtype=jnp.float32)
    fwd_f32 = jax.jit(lambda zz: generator_forward(zz, prep_f32))
    out_f32 = jax.block_until_ready(fwd_f32(z))
    assert out_f32.shape == (batch, output_dim)
    np.testing.assert_allclose(np.asarray(out_f32), np.asarray(ref), rtol=1e-4, atol=1e-4)
    # Second call hits the compiled cache (no per-call param prep).
    jax.block_until_ready(fwd_f32(z))

    # bf16 weights / MXU feed with f32 accumulation: loose tolerance (quantization).
    prep_bf16 = prepare_generator_params(params, param_dtype=jnp.bfloat16)
    out_bf16 = jax.block_until_ready(generator_forward(z, prep_bf16))
    assert out_bf16.shape == (batch, output_dim)
    np.testing.assert_allclose(np.asarray(out_bf16), np.asarray(ref), rtol=1e-1, atol=1e-1)

    print("KERNEL_OK")
</pallas_src>

<mosaic_0001>
module attributes {stable_mosaic.version = 11 : i64} {
  func.func @_generator_kernel(%arg0: i32, %arg1: memref<56x128xf32, #tpu.memory_space<vmem>>, %arg2: memref<128x128xf32, #tpu.memory_space<vmem>>, %arg3: memref<1x128xf32, #tpu.memory_space<vmem>>, %arg4: memref<128x128xf32, #tpu.memory_space<vmem>>, %arg5: memref<1x128xf32, #tpu.memory_space<vmem>>, %arg6: memref<128x128xf32, #tpu.memory_space<vmem>>, %arg7: memref<1x128xf32, #tpu.memory_space<vmem>>, %arg8: memref<56x128xf32, #tpu.memory_space<vmem>>) attributes {dimension_semantics = [#tpu.dimension_semantics<parallel>], iteration_bounds = array<i64: 1>, scalar_prefetch = 0 : i64, scratch_operands = 0 : i64, tpu.core_type = #tpu.core_type<tc>, window_params = [{transform_indices = @transform_0, window_bounds = array<i64: 56, 128>}, {pipeline_mode = #tpu.pipeline_mode<synchronous>, transform_indices = @transform_1, window_bounds = array<i64: 128, 128>}, {pipeline_mode = #tpu.pipeline_mode<synchronous>, transform_indices = @transform_2, window_bounds = array<i64: 1, 128>}, {pipeline_mode = #tpu.pipeline_mode<synchronous>, transform_indices = @transform_3, window_bounds = array<i64: 128, 128>}, {pipeline_mode = #tpu.pipeline_mode<synchronous>, transform_indices = @transform_4, window_bounds = array<i64: 1, 128>}, {pipeline_mode = #tpu.pipeline_mode<synchronous>, transform_indices = @transform_5, window_bounds = array<i64: 128, 128>}, {pipeline_mode = #tpu.pipeline_mode<synchronous>, transform_indices = @transform_6, window_bounds = array<i64: 1, 128>}, {transform_indices = @transform_7, window_bounds = array<i64: 56, 128>}]} {
    %c0 = arith.constant 0 : index
    %c0_0 = arith.constant 0 : index
    %0 = vector.load %arg1[%c0, %c0_0] : memref<56x128xf32, #tpu.memory_space<vmem>>, vector<56x128xf32>
    %c0_1 = arith.constant 0 : index
    %c0_2 = arith.constant 0 : index
    %1 = vector.load %arg2[%c0_1, %c0_2] : memref<128x128xf32, #tpu.memory_space<vmem>>, vector<128x128xf32>
    %cst = arith.constant dense<0.000000e+00> : vector<56x128xf32>
    %2 = tpu.matmul %0, %1, %cst {dimension_numbers = #tpu.dot_dimension_numbers<[1], [0], [0], [1], [0, 0, 1, 1], [], []>} : vector<56x128xf32>, vector<128x128xf32>, vector<56x128xf32> -> vector<56x128xf32>
    %c0_3 = arith.constant 0 : index
    %c0_4 = arith.constant 0 : index
    %3 = vector.load %arg3[%c0_3, %c0_4] : memref<1x128xf32, #tpu.memory_space<vmem>>, vector<1x128xf32>
    %4 = vector.broadcast %3 : vector<1x128xf32> to vector<56x128xf32>
    %5 = arith.addf %2, %4 : vector<56x128xf32>
    %cst_5 = arith.constant 2.000000e-01 : f32
    %6 = vector.broadcast %cst_5 : f32 to vector<56x128xf32>
    %7 = arith.mulf %6, %5 : vector<56x128xf32>
    %8 = arith.maximumf %5, %7 : vector<56x128xf32>
    %c0_6 = arith.constant 0 : index
    %c0_7 = arith.constant 0 : index
    %9 = vector.load %arg4[%c0_6, %c0_7] : memref<128x128xf32, #tpu.memory_space<vmem>>, vector<128x128xf32>
    %cst_8 = arith.constant dense<0.000000e+00> : vector<56x128xf32>
    %10 = tpu.matmul %8, %9, %cst_8 {dimension_numbers = #tpu.dot_dimension_numbers<[1], [0], [0], [1], [0, 0, 1, 1], [], []>} : vector<56x128xf32>, vector<128x128xf32>, vector<56x128xf32> -> vector<56x128xf32>
    %c0_9 = arith.constant 0 : index
    %c0_10 = arith.constant 0 : index
    %11 = vector.load %arg5[%c0_9, %c0_10] : memref<1x128xf32, #tpu.memory_space<vmem>>, vector<1x128xf32>
    %12 = vector.broadcast %11 : vector<1x128xf32> to vector<56x128xf32>
    %13 = arith.addf %10, %12 : vector<56x128xf32>
    %cst_11 = arith.constant 2.000000e-01 : f32
    %14 = vector.broadcast %cst_11 : f32 to vector<56x128xf32>
    %15 = arith.mulf %14, %13 : vector<56x128xf32>
    %16 = arith.maximumf %13, %15 : vector<56x128xf32>
    %c0_12 = arith.constant 0 : index
    %c0_13 = arith.constant 0 : index
    %17 = vector.load %arg6[%c0_12, %c0_13] : memref<128x128xf32, #tpu.memory_space<vmem>>, vector<128x128xf32>
    %cst_14 = arith.constant dense<0.000000e+00> : vector<56x128xf32>
    %18 = tpu.matmul %16, %17, %cst_14 {dimension_numbers = #tpu.dot_dimension_numbers<[1], [0], [0], [1], [0, 0, 1, 1], [], []>} : vector<56x128xf32>, vector<128x128xf32>, vector<56x128xf32> -> vector<56x128xf32>
    %c0_15 = arith.constant 0 : index
    %c0_16 = arith.constant 0 : index
    %19 = vector.load %arg7[%c0_15, %c0_16] : memref<1x128xf32, #tpu.memory_space<vmem>>, vector<1x128xf32>
    %20 = vector.broadcast %19 : vector<1x128xf32> to vector<56x128xf32>
    %21 = arith.addf %18, %20 : vector<56x128xf32>
    %22 = math.tanh %21 : vector<56x128xf32>
    %c0_17 = arith.constant 0 : index
    %c0_18 = arith.constant 0 : index
    %23 = vector.load %arg8[%c0_17, %c0_18] : memref<56x128xf32, #tpu.memory_space<vmem>>, vector<56x128xf32>
    tpu.vector_store %arg8[%c0_17, %c0_18], %22 {strides = array<i32>} : memref<56x128xf32, #tpu.memory_space<vmem>>, vector<56x128xf32>,
    return
  }
  func.func @transform_0(%arg0: i32) -> (i32, i32) {
    %c0_i32 = arith.constant 0 : i32
    %c0_i32_0 = arith.constant 0 : i32
    return %arg0, %c0_i32 : i32, i32
  }
  func.func @transform_1(%arg0: i32) -> (i32, i32) {
    %c0_i32 = arith.constant 0 : i32
    %c0_i32_0 = arith.constant 0 : i32
    %c0_i32_1 = arith.constant 0 : i32
    return %c0_i32, %c0_i32_0 : i32, i32
  }
  func.func @transform_2(%arg0: i32) -> (i32, i32) {
    %c0_i32 = arith.constant 0 : i32
    %c0_i32_0 = arith.constant 0 : i32
    %c0_i32_1 = arith.constant 0 : i32
    return %c0_i32, %c0_i32_0 : i32, i32
  }
  func.func @transform_3(%arg0: i32) -> (i32, i32) {
    %c0_i32 = arith.constant 0 : i32
    %c0_i32_0 = arith.constant 0 : i32
    %c0_i32_1 = arith.constant 0 : i32
    return %c0_i32, %c0_i32_0 : i32, i32
  }
  func.func @transform_4(%arg0: i32) -> (i32, i32) {
    %c0_i32 = arith.constant 0 : i32
    %c0_i32_0 = arith.constant 0 : i32
    %c0_i32_1 = arith.constant 0 : i32
    return %c0_i32, %c0_i32_0 : i32, i32
  }
  func.func @transform_5(%arg0: i32) -> (i32, i32) {
    %c0_i32 = arith.constant 0 : i32
    %c0_i32_0 = arith.constant 0 : i32
    %c0_i32_1 = arith.constant 0 : i32
    return %c0_i32, %c0_i32_0 : i32, i32
  }
  func.func @transform_6(%arg0: i32) -> (i32, i32) {
    %c0_i32 = arith.constant 0 : i32
    %c0_i32_0 = arith.constant 0 : i32
    %c0_i32_1 = arith.constant 0 : i32
    return %c0_i32, %c0_i32_0 : i32, i32
  }
  func.func @transform_7(%arg0: i32) -> (i32, i32) {
    %c0_i32 = arith.constant 0 : i32
    %c0_i32_0 = arith.constant 0 : i32
    return %arg0, %c0_i32 : i32, i32
  }
}

</mosaic_0001>

<llo_original>
// kernel: _lambda_.1
$region0: #{_lambda_.1}
  #allocation0 [shape = 'u32[]', space=smem, size = 0x4, offset = 0x4, fixed_abs, tag = 'smem constant byte address 0x4 - core index']
  #allocation1 [shape = 'u32[144,128]{1,0:T(1,128)}', space=vmem, size = 0x12000, scoped, tag = 'internal scratch']
  %s0 = inlined_call_operand.vmem [shape: f32[56,128], index: 0, kind: input, shape index: {}]
  %s1 = inlined_call_operand.hbm [shape: f32[128,128], index: 1, kind: input, shape index: {}]
  %s2 = inlined_call_operand.vmem [shape: f32[1,128], index: 2, kind: input, shape index: {}]
  %s3 = inlined_call_operand.hbm [shape: f32[128,128], index: 3, kind: input, shape index: {}]
  %s4 = inlined_call_operand.vmem [shape: f32[1,128], index: 4, kind: input, shape index: {}]
  %s5 = inlined_call_operand.vmem [shape: f32[128,128], index: 5, kind: input, shape index: {}]
  %s6 = inlined_call_operand.vmem [shape: f32[1,128], index: 6, kind: input, shape index: {}]
  %s7 = inlined_call_operand.vmem [shape: f32[56,128], index: 7, kind: output, shape index: {}]
  %s8 = sld [smem:[#allocation0]]
  $region46: #{_lambda_.1} parent=0
    _
  %s10 = ssub.s32 1, %s8
  %s11 = scalar_select 0, %s10, %s8
  $region1: #{_lambda_.1} parent=0
    #allocation2 [shape = 'u8[65536]{0}', space=vmem, size = 0x10000, scoped, tag = 'input window, operand 1, single buffered']
    #allocation3 [shape = 's32[1]{0}', space=sflag, size = 0x4, scoped, tag = 'scoped memory for _lambda_.1']
    #allocation4 [shape = 'u8[65536]{0}', space=vmem, size = 0x10000, scoped, tag = 'input window, operand 3, single buffered']
    #allocation5 [shape = 's32[1]{0}', space=sflag, size = 0x4, scoped, tag = 'scoped memory for _lambda_.1']
    %12 = vsyncpa [#allocation3], 0
    %13 = vsyncpa [#allocation5], 0
    // Predicated region
    $region2: #{_lambda_.1} parent=1 // pred_check
      _
    $region3: #{_lambda_.1} parent=1 // pred_check_branch
      %15 = sbr.rel (0) target = $region5
    $region4: #{_lambda_.1} parent=1 // pred_region
      _
    $region5: #{_lambda_.1} parent=1 // pred_fallthru
      _
    // Predicated region
    $region6: #{_lambda_.1} parent=1 // pred_check
      _
    $region7: #{_lambda_.1} parent=1 // pred_check_branch
      %17 = sbr.rel (0) target = $region9
    $region8: #{_lambda_.1} parent=1 // pred_region
      %s19 = ssub.s32 2048, 2048
      %20 = vsyncadd [#allocation3], %s19
      %s21 = sshll.u32 [#allocation2], 4
      %s22 = int_to_ptr.vmem [resolvable:$true] %s21
      %27 = dma.hbm_to_vmem [thread:$0]  %s1, 2048, %s22, [#allocation3], 128, 128, 8
    $region9: #{_lambda_.1} parent=1 // pred_fallthru
      _
    // Predicated region
    $region10: #{_lambda_.1} parent=1 // pred_check
      _
    $region11: #{_lambda_.1} parent=1 // pred_check_branch
      %29 = sbr.rel (0) target = $region13
    $region12: #{_lambda_.1} parent=1 // pred_region
      _
    $region13: #{_lambda_.1} parent=1 // pred_fallthru
      _
    // Predicated region
    $region14: #{_lambda_.1} parent=1 // pred_check
      _
    $region15: #{_lambda_.1} parent=1 // pred_check_branch
      %31 = sbr.rel (0) target = $region17
    $region16: #{_lambda_.1} parent=1 // pred_region
      %s33 = ssub.s32 2048, 2048
      %34 = vsyncadd [#allocation5], %s33
      %s35 = sshll.u32 [#allocation4], 4
      %s36 = int_to_ptr.vmem [resolvable:$true] %s35
      %41 = dma.hbm_to_vmem [thread:$0]  %s3, 2048, %s36, [#allocation5], 128, 128, 8
    $region17: #{_lambda_.1} parent=1 // pred_fallthru
      _
    // Predicated region
    $region18: #{_lambda_.1} parent=1 // pred_check
      _
    $region19: #{_lambda_.1} parent=1 // pred_check_branch
      %43 = sbr.rel (0) target = $region21
    $region20: #{_lambda_.1} parent=1 // pred_region
      _
    $region21: #{_lambda_.1} parent=1 // pred_fallthru
      _
    // Predicated region
    $region22: #{_lambda_.1} parent=1 // pred_check
      _
    $region23: #{_lambda_.1} parent=1 // pred_check_branch
      %45 = sbr.rel (0) target = $region25
    $region24: #{_lambda_.1} parent=1 // pred_region
      _
    $region25: #{_lambda_.1} parent=1 // pred_fallthru
      _
    // Predicated region
    $region26: #{_lambda_.1} parent=1 // pred_check
      _
    $region27: #{_lambda_.1} parent=1 // pred_check_branch
      %47 = sbr.rel (0) target = $region29
    $region28: #{_lambda_.1} parent=1 // pred_region
      _
    $region29: #{_lambda_.1} parent=1 // pred_fallthru
      _
    // Predicated region
    $region30: #{_lambda_.1} parent=1 // pred_check
      _
    $region31: #{_lambda_.1} parent=1 // pred_check_branch
      %49 = sbr.rel (0) target = $region33
    $region32: #{_lambda_.1} parent=1 // pred_region
      %50 = dma.done [#allocation3], 2048
    $region33: #{_lambda_.1} parent=1 // pred_fallthru
      _
    // Predicated region
    $region34: #{_lambda_.1} parent=1 // pred_check
      _
    $region35: #{_lambda_.1} parent=1 // pred_check_branch
      %52 = sbr.rel (0) target = $region37
    $region36: #{_lambda_.1} parent=1 // pred_region
      %53 = dma.done [#allocation5], 2048
    $region37: #{_lambda_.1} parent=1 // pred_fallthru
      _
    %v54 = vld [vmem:[%s0] sm:$0xff]
    %v55 = vld [vmem:[%s0 + $0x8] sm:$0xff]
    %v56 = vld [vmem:[%s0 + $0x10] sm:$0xff]
    %v57 = vld [vmem:[%s0 + $0x18] sm:$0xff]
    %v58 = vld [vmem:[%s0 + $0x20] sm:$0xff]
    %v59 = vld [vmem:[%s0 + $0x28] sm:$0xff]
    %v60 = vld [vmem:[%s0 + $0x30] sm:$0xff]
    %v61 = vld [vmem:[#allocation2] sm:$0xff]
    %v62 = vld [vmem:[#allocation2 + $0x8] sm:$0xff]
    %v63 = vld [vmem:[#allocation2 + $0x10] sm:$0xff]
    %v64 = vld [vmem:[#allocation2 + $0x18] sm:$0xff]
    %v65 = vld [vmem:[#allocation2 + $0x20] sm:$0xff]
    %v66 = vld [vmem:[#allocation2 + $0x28] sm:$0xff]
    %v67 = vld [vmem:[#allocation2 + $0x30] sm:$0xff]
    %v68 = vld [vmem:[#allocation2 + $0x38] sm:$0xff]
    %v69 = vld [vmem:[#allocation2 + $0x40] sm:$0xff]
    %v70 = vld [vmem:[#allocation2 + $0x48] sm:$0xff]
    %v71 = vld [vmem:[#allocation2 + $0x50] sm:$0xff]
    %v72 = vld [vmem:[#allocation2 + $0x58] sm:$0xff]
    %v73 = vld [vmem:[#allocation2 + $0x60] sm:$0xff]
    %v74 = vld [vmem:[#allocation2 + $0x68] sm:$0xff]
    %v75 = vld [vmem:[#allocation2 + $0x70] sm:$0xff]
    %v76 = vld [vmem:[#allocation2 + $0x78] sm:$0xff]
    %v77 = vld [vmem:[%s2] sm:$0x1]
    %v79 = vlaneseq
    %v80 = vshrl.u32 %v79, 7
    %v81 = vsub.s32 0, %v80
    %v82 = vrot.slane %v77, %v81
    %84 = vmatprep.subr.mxu0 0.0
    %85 = vmatpush1.msra.mxu0 %v76
    %86 = vmatprep.subr.mxu0 0.0
    %87 = vmatpush1.msra.mxu0 %v75
    %88 = vmatprep.subr.mxu0 0.0
    %89 = vmatpush1.msra.mxu0 %v74
    %90 = vmatprep.subr.mxu0 0.0
    %91 = vmatpush1.msra.mxu0 %v73
    %92 = vmatprep.subr.mxu0 0.0
    %93 = vmatpush1.msra.mxu0 %v72
    %94 = vmatprep.subr.mxu0 0.0
    %95 = vmatpush1.msra.mxu0 %v71
    %96 = vmatprep.subr.mxu0 0.0
    %97 = vmatpush1.msra.mxu0 %v70
    %98 = vmatprep.subr.mxu0 0.0
    %99 = vmatpush1.msra.mxu0 %v69
    %100 = vmatprep.subr.mxu0 0.0
    %101 = vmatpush1.msra.mxu0 %v68
    %102 = vmatprep.subr.mxu0 0.0
    %103 = vmatpush1.msra.mxu0 %v67
    %104 = vmatprep.subr.mxu0 0.0
    %105 = vmatpush1.msra.mxu0 %v66
    %106 = vmatprep.subr.mxu0 0.0
    %107 = vmatpush1.msra.mxu0 %v65
    %108 = vmatprep.subr.mxu0 0.0
    %109 = vmatpush1.msra.mxu0 %v64
    %110 = vmatprep.subr.mxu0 0.0
    %111 = vmatpush1.msra.mxu0 %v63
    %112 = vmatprep.subr.mxu0 0.0
    %113 = vmatpush1.msra.mxu0 %v62
    %114 = vmatprep.subr.mxu0 0.0
    %115 = vmatpush1.msra.mxu0 %v61
    %116 = vmatprep.subr.mxu0 0.0
    %117 = vmatpush2.msra.mxu0 0.0
    %118 = vmatprep.subr.mxu0 0.0
    %119 = vmatpush2.msra.mxu0 0.0
    %120 = vmatprep.subr.mxu0 0.0
    %121 = vmatpush2.msra.mxu0 0.0
    %122 = vmatprep.subr.mxu0 0.0
    %123 = vmatpush2.msra.mxu0 0.0
    %124 = vmatprep.subr.mxu0 0.0
    %125 = vmatpush2.msra.mxu0 0.0
    %126 = vmatprep.subr.mxu0 0.0
    %127 = vmatpush2.msra.mxu0 0.0
    %128 = vmatprep.subr.mxu0 0.0
    %129 = vmatpush2.msra.mxu0 0.0
    %130 = vmatprep.subr.mxu0 0.0
    %131 = vmatpush2.msra.mxu0 0.0
    %132 = vmatprep.subr.mxu0 0.0
    %133 = vmatpush2.msra.mxu0 0.0
    %134 = vmatprep.subr.mxu0 0.0
    %135 = vmatpush2.msra.mxu0 0.0
    %136 = vmatprep.subr.mxu0 0.0
    %137 = vmatpush2.msra.mxu0 0.0
    %138 = vmatprep.subr.mxu0 0.0
    %139 = vmatpush2.msra.mxu0 0.0
    %140 = vmatprep.subr.mxu0 0.0
    %141 = vmatpush2.msra.mxu0 0.0
    %142 = vmatprep.subr.mxu0 0.0
    %143 = vmatpush2.msra.mxu0 0.0
    %144 = vmatprep.subr.mxu0 0.0
    %145 = vmatpush2.msra.mxu0 0.0
    %146 = vmatprep.subr.mxu0 0.0
    %147 = vmatpush2.msra.mxu0 0.0
    %148 = vmatprep.mubr.f32.mxu0 0.0
    %149 = vmatmul.mubr.f32.gmra.mxu0 %v54
    %v150 = vpop.f32.mrf.mxu0
    %v151 = vadd.f32 %v82, %v150
    %v152 = vpop.f32.mrf.mxu0
    %153 = vmatprep.mubr.f32.mxu0 0.0
    %154 = vmatmul.mubr.f32.gmra.mxu0 %v55
    %v155 = vpop.f32.mrf.mxu0
    %v156 = vadd.f32 %v82, %v155
    %v157 = vpop.f32.mrf.mxu0
    %158 = vmatprep.mubr.f32.mxu0 0.0
    %159 = vmatmul.mubr.f32.gmra.mxu0 %v56
    %v160 = vpop.f32.mrf.mxu0
    %v161 = vadd.f32 %v82, %v160
    %v162 = vpop.f32.mrf.mxu0
    %163 = vmatprep.mubr.f32.mxu0 0.0
    %164 = vmatmul.mubr.f32.gmra.mxu0 %v57
    %v165 = vpop.f32.mrf.mxu0
    %v166 = vadd.f32 %v82, %v165
    %v167 = vpop.f32.mrf.mxu0
    %168 = vmatprep.mubr.f32.mxu0 0.0
    %169 = vmatmul.mubr.f32.gmra.mxu0 %v58
    %v170 = vpop.f32.mrf.mxu0
    %v171 = vadd.f32 %v82, %v170
    %v172 = vpop.f32.mrf.mxu0
    %173 = vmatprep.mubr.f32.mxu0 0.0
    %174 = vmatmul.mubr.f32.gmra.mxu0 %v59
    %v175 = vpop.f32.mrf.mxu0
    %v176 = vadd.f32 %v82, %v175
    %v177 = vpop.f32.mrf.mxu0
    %178 = vmatprep.mubr.f32.mxu0 0.0
    %179 = vmatmul.mubr.f32.gmra.mxu0 %v60
    %v180 = vpop.f32.mrf.mxu0
    %v181 = vadd.f32 %v82, %v180
    %v182 = vpop.f32.mrf.mxu0
    %183 = vdwg.mxu0
    %v184 = vmul.f32 %v151, 0.2
    %v185 = vmul.f32 %v156, 0.2
    %v186 = vmul.f32 %v161, 0.2
    %v187 = vmul.f32 %v166, 0.2
    %v188 = vmul.f32 %v171, 0.2
    %v189 = vmul.f32 %v176, 0.2
    %v190 = vmul.f32 %v181, 0.2
    %v191 = vmax.f32 %v151, %v184
    %v192 = vmax.f32 %v156, %v185
    %v193 = vmax.f32 %v161, %v186
    %v194 = vmax.f32 %v166, %v187
    %v195 = vmax.f32 %v171, %v188
    %v196 = vmax.f32 %v176, %v189
    %v197 = vmax.f32 %v181, %v190
    %v198 = vld [vmem:[#allocation4] sm:$0xff]
    %v199 = vld [vmem:[#allocation4 + $0x8] sm:$0xff]
    %v200 = vld [vmem:[#allocation4 + $0x10] sm:$0xff]
    %v201 = vld [vmem:[#allocation4 + $0x18] sm:$0xff]
    %v202 = vld [vmem:[#allocation4 + $0x20] sm:$0xff]
    %v203 = vld [vmem:[#allocation4 + $0x28] sm:$0xff]
    %v204 = vld [vmem:[#allocation4 + $0x30] sm:$0xff]
    %v205 = vld [vmem:[#allocation4 + $0x38] sm:$0xff]
    %v206 = vld [vmem:[#allocation4 + $0x40] sm:$0xff]
    %v207 = vld [vmem:[#allocation4 + $0x48] sm:$0xff]
    %v208 = vld [vmem:[#allocation4 + $0x50] sm:$0xff]
    %v209 = vld [vmem:[#allocation4 + $0x58] sm:$0xff]
    %v210 = vld [vmem:[#allocation4 + $0x60] sm:$0xff]
    %v211 = vld [vmem:[#allocation4 + $0x68] sm:$0xff]
    %v212 = vld [vmem:[#allocation4 + $0x70] sm:$0xff]
    %v213 = vld [vmem:[#allocation4 + $0x78] sm:$0xff]
    %v214 = vld [vmem:[%s4] sm:$0x1]
    %v216 = vlaneseq
    %v217 = vshrl.u32 %v216, 7
    %v218 = vsub.s32 0, %v217
    %v219 = vrot.slane %v214, %v218
    %221 = vmatprep.subr.mxu0 0.0
    %222 = vmatpush1.msra.mxu0 %v213
    %223 = vmatprep.subr.mxu0 0.0
    %224 = vmatpush1.msra.mxu0 %v212
    %225 = vmatprep.subr.mxu0 0.0
    %226 = vmatpush1.msra.mxu0 %v211
    %227 = vmatprep.subr.mxu0 0.0
    %228 = vmatpush1.msra.mxu0 %v210
    %229 = vmatprep.subr.mxu0 0.0
    %230 = vmatpush1.msra.mxu0 %v209
    %231 = vmatprep.subr.mxu0 0.0
    %232 = vmatpush1.msra.mxu0 %v208
    %233 = vmatprep.subr.mxu0 0.0
    %234 = vmatpush1.msra.mxu0 %v207
    %235 = vmatprep.subr.mxu0 0.0
    %236 = vmatpush1.msra.mxu0 %v206
    %237 = vmatprep.subr.mxu0 0.0
    %238 = vmatpush1.msra.mxu0 %v205
    %239 = vmatprep.subr.mxu0 0.0
    %240 = vmatpush1.msra.mxu0 %v204
    %241 = vmatprep.subr.mxu0 0.0
    %242 = vmatpush1.msra.mxu0 %v203
    %243 = vmatprep.subr.mxu0 0.0
    %244 = vmatpush1.msra.mxu0 %v202
    %245 = vmatprep.subr.mxu0 0.0
    %246 = vmatpush1.msra.mxu0 %v201
    %247 = vmatprep.subr.mxu0 0.0
    %248 = vmatpush1.msra.mxu0 %v200
    %249 = vmatprep.subr.mxu0 0.0
    %250 = vmatpush1.msra.mxu0 %v199
    %251 = vmatprep.subr.mxu0 0.0
    %252 = vmatpush1.msra.mxu0 %v198
    %253 = vmatprep.subr.mxu0 0.0
    %254 = vmatpush2.msra.mxu0 0.0
    %255 = vmatprep.subr.mxu0 0.0
    %256 = vmatpush2.msra.mxu0 0.0
    %257 = vmatprep.subr.mxu0 0.0
    %258 = vmatpush2.msra.mxu0 0.0
    %259 = vmatprep.subr.mxu0 0.0
    %260 = vmatpush2.msra.mxu0 0.0
    %261 = vmatprep.subr.mxu0 0.0
    %262 = vmatpush2.msra.mxu0 0.0
    %263 = vmatprep.subr.mxu0 0.0
    %264 = vmatpush2.msra.mxu0 0.0
    %265 = vmatprep.subr.mxu0 0.0
    %266 = vmatpush2.msra.mxu0 0.0
    %267 = vmatprep.subr.mxu0 0.0
    %268 = vmatpush2.msra.mxu0 0.0
    %269 = vmatprep.subr.mxu0 0.0
    %270 = vmatpush2.msra.mxu0 0.0
    %271 = vmatprep.subr.mxu0 0.0
    %272 = vmatpush2.msra.mxu0 0.0
    %273 = vmatprep.subr.mxu0 0.0
    %274 = vmatpush2.msra.mxu0 0.0
    %275 = vmatprep.subr.mxu0 0.0
    %276 = vmatpush2.msra.mxu0 0.0
    %277 = vmatprep.subr.mxu0 0.0
    %278 = vmatpush2.msra.mxu0 0.0
    %279 = vmatprep.subr.mxu0 0.0
    %280 = vmatpush2.msra.mxu0 0.0
    %281 = vmatprep.subr.mxu0 0.0
    %282 = vmatpush2.msra.mxu0 0.0
    %283 = vmatprep.subr.mxu0 0.0
    %284 = vmatpush2.msra.mxu0 0.0
    %285 = vmatprep.mubr.f32.mxu0 0.0
    %286 = vmatmul.mubr.f32.gmra.mxu0 %v191
    %v287 = vpop.f32.mrf.mxu0
    %v288 = vadd.f32 %v219, %v287
    %v289 = vpop.f32.mrf.mxu0
    %290 = vmatprep.mubr.f32.mxu0 0.0
    %291 = vmatmul.mubr.f32.gmra.mxu0 %v192
    %v292 = vpop.f32.mrf.mxu0
    %v293 = vadd.f32 %v219, %v292
    %v294 = vpop.f32.mrf.mxu0
    %295 = vmatprep.mubr.f32.mxu0 0.0
    %296 = vmatmul.mubr.f32.gmra.mxu0 %v193
    %v297 = vpop.f32.mrf.mxu0
    %v298 = vadd.f32 %v219, %v297
    %v299 = vpop.f32.mrf.mxu0
    %300 = vmatprep.mubr.f32.mxu0 0.0
    %301 = vmatmul.mubr.f32.gmra.mxu0 %v194
    %v302 = vpop.f32.mrf.mxu0
    %v303 = vadd.f32 %v219, %v302
    %v304 = vpop.f32.mrf.mxu0
    %305 = vmatprep.mubr.f32.mxu0 0.0
    %306 = vmatmul.mubr.f32.gmra.mxu0 %v195
    %v307 = vpop.f32.mrf.mxu0
    %v308 = vadd.f32 %v219, %v307
    %v309 = vpop.f32.mrf.mxu0
    %310 = vmatprep.mubr.f32.mxu0 0.0
    %311 = vmatmul.mubr.f32.gmra.mxu0 %v196
    %v312 = vpop.f32.mrf.mxu0
    %v313 = vadd.f32 %v219, %v312
    %v314 = vpop.f32.mrf.mxu0
    %315 = vmatprep.mubr.f32.mxu0 0.0
    %316 = vmatmul.mubr.f32.gmra.mxu0 %v197
    %v317 = vpop.f32.mrf.mxu0
    %v318 = vadd.f32 %v219, %v317
    %v319 = vpop.f32.mrf.mxu0
    %320 = vdwg.mxu0
    %v321 = vmul.f32 %v288, 0.2
    %v322 = vmul.f32 %v293, 0.2
    %v323 = vmul.f32 %v298, 0.2
    %v324 = vmul.f32 %v303, 0.2
    %v325 = vmul.f32 %v308, 0.2
    %v326 = vmul.f32 %v313, 0.2
    %v327 = vmul.f32 %v318, 0.2
    %v328 = vmax.f32 %v288, %v321
    %v329 = vmax.f32 %v293, %v322
    %v330 = vmax.f32 %v298, %v323
    %v331 = vmax.f32 %v303, %v324
    %v332 = vmax.f32 %v308, %v325
    %v333 = vmax.f32 %v313, %v326
    %v334 = vmax.f32 %v318, %v327
    %v335 = vld [vmem:[%s5] sm:$0xff]
    %v336 = vld [vmem:[%s5 + $0x8] sm:$0xff]
    %v337 = vld [vmem:[%s5 + $0x10] sm:$0xff]
    %v338 = vld [vmem:[%s5 + $0x18] sm:$0xff]
    %v339 = vld [vmem:[%s5 + $0x20] sm:$0xff]
    %v340 = vld [vmem:[%s5 + $0x28] sm:$0xff]
    %v341 = vld [vmem:[%s5 + $0x30] sm:$0xff]
    %v342 = vld [vmem:[%s5 + $0x38] sm:$0xff]
    %v343 = vld [vmem:[%s5 + $0x40] sm:$0xff]
    %v344 = vld [vmem:[%s5 + $0x48] sm:$0xff]
    %v345 = vld [vmem:[%s5 + $0x50] sm:$0xff]
    %v346 = vld [vmem:[%s5 + $0x58] sm:$0xff]
    %v347 = vld [vmem:[%s5 + $0x60] sm:$0xff]
    %v348 = vld [vmem:[%s5 + $0x68] sm:$0xff]
    %v349 = vld [vmem:[%s5 + $0x70] sm:$0xff]
    %v350 = vld [vmem:[%s5 + $0x78] sm:$0xff]
    %v351 = vld [vmem:[%s6] sm:$0x1]
    %v353 = vlaneseq
    %v354 = vshrl.u32 %v353, 7
    %v355 = vsub.s32 0, %v354
    %v356 = vrot.slane %v351, %v355
    %358 = vmatprep.subr.mxu0 0.0
    %359 = vmatpush1.msra.mxu0 %v350
    %360 = vmatprep.subr.mxu0 0.0
    %361 = vmatpush1.msra.mxu0 %v349
    %362 = vmatprep.subr.mxu0 0.0
    %363 = vmatpush1.msra.mxu0 %v348
    %364 = vmatprep.subr.mxu0 0.0
    %365 = vmatpush1.msra.mxu0 %v347
    %366 = vmatprep.subr.mxu0 0.0
    %367 = vmatpush1.msra.mxu0 %v346
    %368 = vmatprep.subr.mxu0 0.0
    %369 = vmatpush1.msra.mxu0 %v345
    %370 = vmatprep.subr.mxu0 0.0
    %371 = vmatpush1.msra.mxu0 %v344
    %372 = vmatprep.subr.mxu0 0.0
    %373 = vmatpush1.msra.mxu0 %v343
    %374 = vmatprep.subr.mxu0 0.0
    %375 = vmatpush1.msra.mxu0 %v342
    %376 = vmatprep.subr.mxu0 0.0
    %377 = vmatpush1.msra.mxu0 %v341
    %378 = vmatprep.subr.mxu0 0.0
    %379 = vmatpush1.msra.mxu0 %v340
    %380 = vmatprep.subr.mxu0 0.0
    %381 = vmatpush1.msra.mxu0 %v339
    %382 = vmatprep.subr.mxu0 0.0
    %383 = vmatpush1.msra.mxu0 %v338
    %384 = vmatprep.subr.mxu0 0.0
    %385 = vmatpush1.msra.mxu0 %v337
    %386 = vmatprep.subr.mxu0 0.0
    %387 = vmatpush1.msra.mxu0 %v336
    %388 = vmatprep.subr.mxu0 0.0
    %389 = vmatpush1.msra.mxu0 %v335
    %390 = vmatprep.subr.mxu0 0.0
    %391 = vmatpush2.msra.mxu0 0.0
    %392 = vmatprep.subr.mxu0 0.0
    %393 = vmatpush2.msra.mxu0 0.0
    %394 = vmatprep.subr.mxu0 0.0
    %395 = vmatpush2.msra.mxu0 0.0
    %396 = vmatprep.subr.mxu0 0.0
    %397 = vmatpush2.msra.mxu0 0.0
    %398 = vmatprep.subr.mxu0 0.0
    %399 = vmatpush2.msra.mxu0 0.0
    %400 = vmatprep.subr.mxu0 0.0
    %401 = vmatpush2.msra.mxu0 0.0
    %402 = vmatprep.subr.mxu0 0.0
    %403 = vmatpush2.msra.mxu0 0.0
    %404 = vmatprep.subr.mxu0 0.0
    %405 = vmatpush2.msra.mxu0 0.0
    %406 = vmatprep.subr.mxu0 0.0
    %407 = vmatpush2.msra.mxu0 0.0
    %408 = vmatprep.subr.mxu0 0.0
    %409 = vmatpush2.msra.mxu0 0.0
    %410 = vmatprep.subr.mxu0 0.0
    %411 = vmatpush2.msra.mxu0 0.0
    %412 = vmatprep.subr.mxu0 0.0
    %413 = vmatpush2.msra.mxu0 0.0
    %414 = vmatprep.subr.mxu0 0.0
    %415 = vmatpush2.msra.mxu0 0.0
    %416 = vmatprep.subr.mxu0 0.0
    %417 = vmatpush2.msra.mxu0 0.0
    %418 = vmatprep.subr.mxu0 0.0
    %419 = vmatpush2.msra.mxu0 0.0
    %420 = vmatprep.subr.mxu0 0.0
    %421 = vmatpush2.msra.mxu0 0.0
    %422 = vmatprep.mubr.f32.mxu0 0.0
    %423 = vmatmul.mubr.f32.gmra.mxu0 %v328
    %v424 = vpop.f32.mrf.mxu0
    %v425 = vadd.f32 %v356, %v424
    %v426 = vpop.f32.mrf.mxu0
    %427 = vmatprep.mubr.f32.mxu0 0.0
    %428 = vmatmul.mubr.f32.gmra.mxu0 %v329
    %v429 = vpop.f32.mrf.mxu0
    %v430 = vadd.f32 %v356, %v429
    %v431 = vpop.f32.mrf.mxu0
    %432 = vmatprep.mubr.f32.mxu0 0.0
    %433 = vmatmul.mubr.f32.gmra.mxu0 %v330
    %v434 = vpop.f32.mrf.mxu0
    %v435 = vadd.f32 %v356, %v434
    %v436 = vpop.f32.mrf.mxu0
    %437 = vmatprep.mubr.f32.mxu0 0.0
    %438 = vmatmul.mubr.f32.gmra.mxu0 %v331
    %v439 = vpop.f32.mrf.mxu0
    %v440 = vadd.f32 %v356, %v439
    %v441 = vpop.f32.mrf.mxu0
    %442 = vmatprep.mubr.f32.mxu0 0.0
    %443 = vmatmul.mubr.f32.gmra.mxu0 %v332
    %v444 = vpop.f32.mrf.mxu0
    %v445 = vadd.f32 %v356, %v444
    %v446 = vpop.f32.mrf.mxu0
    %447 = vmatprep.mubr.f32.mxu0 0.0
    %448 = vmatmul.mubr.f32.gmra.mxu0 %v333
    %v449 = vpop.f32.mrf.mxu0
    %v450 = vadd.f32 %v356, %v449
    %v451 = vpop.f32.mrf.mxu0
    %452 = vmatprep.mubr.f32.mxu0 0.0
    %453 = vmatmul.mubr.f32.gmra.mxu0 %v334
    %v454 = vpop.f32.mrf.mxu0
    %v455 = vadd.f32 %v356, %v454
    %v456 = vpop.f32.mrf.mxu0
    %457 = vdwg.mxu0
    %v458 = vtanh.pop %v425
    %v459 = vtanh.pop %v430
    %v460 = vtanh.pop %v435
    %v461 = vtanh.pop %v440
    %v462 = vtanh.pop %v445
    %v463 = vtanh.pop %v450
    %v464 = vtanh.pop %v455
    %465 = vst [vmem:[%s7] sm:$0xff] %v458
    %466 = vst [vmem:[%s7 + $0x8] sm:$0xff] %v459
    %467 = vst [vmem:[%s7 + $0x10] sm:$0xff] %v460
    %468 = vst [vmem:[%s7 + $0x18] sm:$0xff] %v461
    %469 = vst [vmem:[%s7 + $0x20] sm:$0xff] %v462
    %470 = vst [vmem:[%s7 + $0x28] sm:$0xff] %v463
    %471 = vst [vmem:[%s7 + $0x30] sm:$0xff] %v464
    // Predicated region
    $region38: #{_lambda_.1} parent=1 // pred_check
      _
    $region39: #{_lambda_.1} parent=1 // pred_check_branch
      %473 = sbr.rel (0) target = $region41
    $region40: #{_lambda_.1} parent=1 // pred_region
      _
    $region41: #{_lambda_.1} parent=1 // pred_fallthru
      _
    // Predicated region
    $region42: #{_lambda_.1} parent=1 // pred_check
      _
    $region43: #{_lambda_.1} parent=1 // pred_check_branch
      %475 = sbr.rel (0) target = $region45
    $region44: #{_lambda_.1} parent=1 // pred_region
      _
    $region45: #{_lambda_.1} parent=1 // pred_fallthru
      _
    %476 = vsyncpa [#allocation3], 1
    %477 = vsyncpa [#allocation5], 1

</llo_original>
